<compile_context>
chip_gen: v7x
topology: tpu7x:2x2x1
jax: 0.10.0
libtpu: 0.0.40
codegen_flags: <defaults>
</compile_context>

<pallas_src>
import jax
import jax.numpy as jnp
from jax.experimental import pallas as pl
from jax.experimental.pallas import tpu as pltpu

# ------------------------- problem configuration -------------------------
N = 2            # batch
C_IN = 8         # inp_channels (divisible by n_groups)
C_OUT = 16       # out_channels
H = W = 16       # spatial
KH = KW = 3      # kernel_size
N_GROUPS = 8
EPS = 1e-5
HW = H * W
H_OUT = H - KH + 1    # padding=0, stride=1
W_OUT = W - KW + 1
K_IM2COL = KH * KW * C_IN
# TODO(synk): Dropout(p=0.0) is the identity at inference; for p>0 add
#             pltpu.prng_seed / pltpu.prng_random_bits masking in the kernel.


def _fused_kernel(x_ref, g_ref, b_ref, w_ref, bias_ref, o_ref):
    """x_ref: (N*C_IN, HW)   g_ref/b_ref: (N*C_IN, 1)
       w_ref: (C_OUT, K_IM2COL)   bias_ref: (C_OUT, 1)   o_ref: (N, C_OUT, HW)."""
    x = x_ref[...]                                              # f32 (N*C_IN, HW)

    # ---- GroupNorm (biased variance, PyTorch semantics), stats per (batch, group)
    cg = C_IN // N_GROUPS
    xg = x.reshape(N * N_GROUPS, cg * HW)
    mean = jnp.mean(xg, axis=-1, keepdims=True)
    var = jnp.mean(jnp.square(xg - mean), axis=-1, keepdims=True)
    xn = ((xg - mean) * jax.lax.rsqrt(var + EPS)).reshape(N * C_IN, HW)

    # ---- folded affine: gamma*(1+scale), beta*(1+scale)+shift (per batch-row)
    y = xn * g_ref[...] + b_ref[...]

    # ---- Mish(y) = y * tanh(softplus(y)) via a single exp:
    #   t = exp(-|y|)
    #   y >= 0: tanh(sp) = (1 + 2t)   / (1 + 2t + 2t^2)
    #   y <  0: tanh(sp) = (t^2 + 2t) / (t^2 + 2t + 2)
    t = jnp.exp(-jnp.abs(y))
    pos = y >= 0.0
    num = jnp.where(pos, 1.0 + 2.0 * t, t * (t + 2.0))
    den = num + 2.0 * jnp.where(pos, t * t, 1.0)
    act = y * num / den                                         # (N*C_IN, HW)

    # ---- Conv2d (valid, stride 1) as im2col + MXU matmul.
    # One XLU roll per tap on the FULL slab (each row rolls independently):
    #   shifted_d[r, p] = act[r, (p + d) mod HW]
    # wrap-around only pollutes the invalid h>=H_OUT / w>=W_OUT positions,
    # which the wrapper slices off.
    shifted = [act if (kh == 0 and kw == 0)
               else pltpu.roll(act, HW - (kh * W + kw), 1)
               for kh in range(KH) for kw in range(KW)]         # 9 taps, 8 rolls

    w = w_ref[...]                                              # (C_OUT, K_IM2COL)
    bias = bias_ref[...]                                        # (C_OUT, 1)
    for n in range(N):
        # sublane-tile-aligned row slices only (C_IN = 8 rows each)
        patches = jnp.concatenate(
            [s[n * C_IN:(n + 1) * C_IN, :] for s in shifted], axis=0)  # (72, HW)
        res = jnp.dot(w, patches,
                      preferred_element_type=jnp.float32) + bias       # (C_OUT, HW)
        o_ref[n] = res                                          # lane-dense store


@jax.jit
def scale_shift_conv2d_block(x, embed, gamma, beta, conv_w, conv_b):
    # embed: (N, 2*C_IN, 1, 1) -> scale, shift of shape (N, C_IN)
    emb = embed.reshape(N, 2 * C_IN)
    scale, shift = jnp.split(emb, 2, axis=1)
    g_eff = (gamma[None, :] * (1.0 + scale)).reshape(N * C_IN, 1)
    b_eff = (beta[None, :] * (1.0 + scale) + shift).reshape(N * C_IN, 1)

    x2 = x.reshape(N * C_IN, HW)
    # weight -> (C_OUT, KH*KW*C_IN); column index = (kh*KW + kw)*C_IN + ci
    w2 = jnp.transpose(conv_w, (0, 2, 3, 1)).reshape(C_OUT, K_IM2COL)
    b2 = conv_b.reshape(C_OUT, 1)

    out = pl.pallas_call(
        _fused_kernel,
        out_shape=jax.ShapeDtypeStruct((N, C_OUT, HW), jnp.float32),
        grid_spec=pltpu.PrefetchScalarGridSpec(
            num_scalar_prefetch=0,
            grid=(1,),
            in_specs=[
                pl.BlockSpec((N * C_IN, HW), lambda i: (0, 0)),
                pl.BlockSpec((N * C_IN, 1), lambda i: (0, 0)),
                pl.BlockSpec((N * C_IN, 1), lambda i: (0, 0)),
                pl.BlockSpec((C_OUT, K_IM2COL), lambda i: (0, 0)),
                pl.BlockSpec((C_OUT, 1), lambda i: (0, 0)),
            ],
            out_specs=pl.BlockSpec((N, C_OUT, HW), lambda i: (0, 0, 0)),
        ),
        compiler_params=pltpu.CompilerParams(
            dimension_semantics=("arbitrary",)),
    )(x2, g_eff, b_eff, w2, b2)

    # lane-dense (C_OUT, 256) result; slice the valid 14x14 window here.
    return out.reshape(N, C_OUT, H, W)[:, :, :H_OUT, :W_OUT]


# ------------------------- pure-JAX reference -------------------------
def reference(x, embed, gamma, beta, conv_w, conv_b):
    xg = x.reshape(N, N_GROUPS, C_IN // N_GROUPS, H, W)
    mean = xg.mean(axis=(2, 3, 4), keepdims=True)
    var = ((xg - mean) ** 2).mean(axis=(2, 3, 4), keepdims=True)
    xn = ((xg - mean) / jnp.sqrt(var + EPS)).reshape(N, C_IN, H, W)
    xn = xn * gamma[None, :, None, None] + beta[None, :, None, None]
    scale, shift = jnp.split(embed, 2, axis=1)
    y = xn * (1.0 + scale) + shift
    y = y * jnp.tanh(jax.nn.softplus(y))                   # Mish
    out = jax.lax.conv_general_dilated(
        y, conv_w, window_strides=(1, 1), padding="VALID",
        dimension_numbers=("NCHW", "OIHW", "NCHW"))
    return out + conv_b[None, :, None, None]


if __name__ == "__main__":
    key = jax.random.PRNGKey(0)
    k_x, k_e, k_g, k_b, k_w, k_cb = jax.random.split(key, 6)

    x = jax.random.normal(k_x, (N, C_IN, H, W), dtype=jnp.float32)
    embed = jax.random.normal(k_e, (N, 2 * C_IN, 1, 1), dtype=jnp.float32)
    gamma = 1.0 + 0.1 * jax.random.normal(k_g, (C_IN,), dtype=jnp.float32)
    beta = 0.1 * jax.random.normal(k_b, (C_IN,), dtype=jnp.float32)
    conv_w = 0.1 * jax.random.normal(k_w, (C_OUT, C_IN, KH, KW), dtype=jnp.float32)
    conv_b = 0.1 * jax.random.normal(k_cb, (C_OUT,), dtype=jnp.float32)

    out = scale_shift_conv2d_block(x, embed, gamma, beta, conv_w, conv_b)
    out = jax.block_until_ready(out)

    ref = reference(x, embed, gamma, beta, conv_w, conv_b)
    assert out.shape == (N, C_OUT, H_OUT, W_OUT), out.shape
    assert jnp.allclose(out, ref, atol=1e-4, rtol=1e-4), float(jnp.abs(out - ref).max())

    print("KERNEL_OK")
</pallas_src>

<mosaic_0001>
module attributes {stable_mosaic.version = 11 : i64} {
  func.func @_fused_kernel(%arg0: i32, %arg1: memref<16x256xf32, #tpu.memory_space<vmem>>, %arg2: memref<16x1xf32, #tpu.memory_space<vmem>>, %arg3: memref<16x1xf32, #tpu.memory_space<vmem>>, %arg4: memref<16x72xf32, #tpu.memory_space<vmem>>, %arg5: memref<16x1xf32, #tpu.memory_space<vmem>>, %arg6: memref<2x16x256xf32, #tpu.memory_space<vmem>>) attributes {dimension_semantics = [#tpu.dimension_semantics<arbitrary>], iteration_bounds = array<i64: 1>, scalar_prefetch = 0 : i64, scratch_operands = 0 : i64, tpu.core_type = #tpu.core_type<tc>, window_params = [{pipeline_mode = #tpu.pipeline_mode<synchronous>, transform_indices = @transform_0, window_bounds = array<i64: 16, 256>}, {pipeline_mode = #tpu.pipeline_mode<synchronous>, transform_indices = @transform_1, window_bounds = array<i64: 16, 1>}, {pipeline_mode = #tpu.pipeline_mode<synchronous>, transform_indices = @transform_2, window_bounds = array<i64: 16, 1>}, {pipeline_mode = #tpu.pipeline_mode<synchronous>, transform_indices = @transform_3, window_bounds = array<i64: 16, 72>}, {pipeline_mode = #tpu.pipeline_mode<synchronous>, transform_indices = @transform_4, window_bounds = array<i64: 16, 1>}, {pipeline_mode = #tpu.pipeline_mode<synchronous>, transform_indices = @transform_5, window_bounds = array<i64: 2, 16, 256>}]} {
    %c0 = arith.constant 0 : index
    %c0_0 = arith.constant 0 : index
    %0 = vector.load %arg1[%c0, %c0_0] : memref<16x256xf32, #tpu.memory_space<vmem>>, vector<16x256xf32>
    %cst = arith.constant dense<0.000000e+00> : vector<16xf32>
    %1 = vector.multi_reduction <add>, %0, %cst [1] : vector<16x256xf32> to vector<16xf32>
    %2 = vector.shape_cast %1 : vector<16xf32> to vector<16x1xf32>
    %cst_1 = arith.constant 2.560000e+02 : f32
    %3 = vector.broadcast %cst_1 : f32 to vector<16x1xf32>
    %4 = arith.divf %2, %3 : vector<16x1xf32>
    %5 = vector.broadcast %4 : vector<16x1xf32> to vector<16x256xf32>
    %6 = arith.subf %0, %5 : vector<16x256xf32>
    %7 = arith.mulf %6, %6 : vector<16x256xf32>
    %cst_2 = arith.constant dense<0.000000e+00> : vector<16xf32>
    %8 = vector.multi_reduction <add>, %7, %cst_2 [1] : vector<16x256xf32> to vector<16xf32>
    %9 = vector.shape_cast %8 : vector<16xf32> to vector<16x1xf32>
    %cst_3 = arith.constant 2.560000e+02 : f32
    %10 = vector.broadcast %cst_3 : f32 to vector<16x1xf32>
    %11 = arith.divf %9, %10 : vector<16x1xf32>
    %12 = vector.broadcast %4 : vector<16x1xf32> to vector<16x256xf32>
    %13 = arith.subf %0, %12 : vector<16x256xf32>
    %cst_4 = arith.constant 9.99999974E-6 : f32
    %14 = vector.broadcast %cst_4 : f32 to vector<16x1xf32>
    %15 = arith.addf %11, %14 : vector<16x1xf32>
    %16 = math.rsqrt %15 : vector<16x1xf32>
    %17 = vector.broadcast %16 : vector<16x1xf32> to vector<16x256xf32>
    %18 = arith.mulf %13, %17 : vector<16x256xf32>
    %c0_5 = arith.constant 0 : index
    %c0_6 = arith.constant 0 : index
    %19 = vector.load %arg2[%c0_5, %c0_6] : memref<16x1xf32, #tpu.memory_space<vmem>>, vector<16x1xf32>
    %20 = vector.broadcast %19 : vector<16x1xf32> to vector<16x256xf32>
    %21 = arith.mulf %18, %20 : vector<16x256xf32>
    %c0_7 = arith.constant 0 : index
    %c0_8 = arith.constant 0 : index
    %22 = vector.load %arg3[%c0_7, %c0_8] : memref<16x1xf32, #tpu.memory_space<vmem>>, vector<16x1xf32>
    %23 = vector.broadcast %22 : vector<16x1xf32> to vector<16x256xf32>
    %24 = arith.addf %21, %23 : vector<16x256xf32>
    %25 = math.absf %24 : vector<16x256xf32>
    %cst_9 = arith.constant 0.000000e+00 : f32
    %26 = vector.broadcast %cst_9 : f32 to vector<16x256xf32>
    %27 = arith.subf %26, %25 : vector<16x256xf32>
    %28 = math.exp %27 : vector<16x256xf32>
    %cst_10 = arith.constant 0.000000e+00 : f32
    %29 = vector.broadcast %cst_10 : f32 to vector<16x256xf32>
    %30 = arith.cmpf oge, %24, %29 : vector<16x256xf32>
    %cst_11 = arith.constant 2.000000e+00 : f32
    %31 = vector.broadcast %cst_11 : f32 to vector<16x256xf32>
    %32 = arith.mulf %31, %28 : vector<16x256xf32>
    %cst_12 = arith.constant 1.000000e+00 : f32
    %33 = vector.broadcast %cst_12 : f32 to vector<16x256xf32>
    %34 = arith.addf %33, %32 : vector<16x256xf32>
    %cst_13 = arith.constant 2.000000e+00 : f32
    %35 = vector.broadcast %cst_13 : f32 to vector<16x256xf32>
    %36 = arith.addf %28, %35 : vector<16x256xf32>
    %37 = arith.mulf %28, %36 : vector<16x256xf32>
    %38 = arith.select %30, %34, %37 : vector<16x256xi1>, vector<16x256xf32>
    %39 = arith.mulf %28, %28 : vector<16x256xf32>
    %cst_14 = arith.constant 1.000000e+00 : f32
    %40 = vector.broadcast %cst_14 : f32 to vector<16x256xf32>
    %41 = arith.select %30, %39, %40 : vector<16x256xi1>, vector<16x256xf32>
    %cst_15 = arith.constant 2.000000e+00 : f32
    %42 = vector.broadcast %cst_15 : f32 to vector<16x256xf32>
    %43 = arith.mulf %42, %41 : vector<16x256xf32>
    %44 = arith.addf %38, %43 : vector<16x256xf32>
    %45 = arith.mulf %24, %38 : vector<16x256xf32>
    %46 = arith.divf %45, %44 : vector<16x256xf32>
    %c255_i32 = arith.constant 255 : i32
    %47 = tpu.dynamic_rotate %46 by %c255_i32 dim 1 : vector<16x256xf32>, i32 -> vector<16x256xf32>
    %c254_i32 = arith.constant 254 : i32
    %48 = tpu.dynamic_rotate %46 by %c254_i32 dim 1 : vector<16x256xf32>, i32 -> vector<16x256xf32>
    %c240_i32 = arith.constant 240 : i32
    %49 = tpu.dynamic_rotate %46 by %c240_i32 dim 1 : vector<16x256xf32>, i32 -> vector<16x256xf32>
    %c239_i32 = arith.constant 239 : i32
    %50 = tpu.dynamic_rotate %46 by %c239_i32 dim 1 : vector<16x256xf32>, i32 -> vector<16x256xf32>
    %c238_i32 = arith.constant 238 : i32
    %51 = tpu.dynamic_rotate %46 by %c238_i32 dim 1 : vector<16x256xf32>, i32 -> vector<16x256xf32>
    %c224_i32 = arith.constant 224 : i32
    %52 = tpu.dynamic_rotate %46 by %c224_i32 dim 1 : vector<16x256xf32>, i32 -> vector<16x256xf32>
    %c223_i32 = arith.constant 223 : i32
    %53 = tpu.dynamic_rotate %46 by %c223_i32 dim 1 : vector<16x256xf32>, i32 -> vector<16x256xf32>
    %c222_i32 = arith.constant 222 : i32
    %54 = tpu.dynamic_rotate %46 by %c222_i32 dim 1 : vector<16x256xf32>, i32 -> vector<16x256xf32>
    %c0_16 = arith.constant 0 : index
    %c0_17 = arith.constant 0 : index
    %55 = vector.load %arg4[%c0_16, %c0_17] : memref<16x72xf32, #tpu.memory_space<vmem>>, vector<16x72xf32>
    %c0_18 = arith.constant 0 : index
    %c0_19 = arith.constant 0 : index
    %56 = vector.load %arg5[%c0_18, %c0_19] : memref<16x1xf32, #tpu.memory_space<vmem>>, vector<16x1xf32>
    %57 = vector.extract_strided_slice %46 {offsets = [0, 0], sizes = [8, 256], strides = [1, 1]} : vector<16x256xf32> to vector<8x256xf32>
    %58 = vector.extract_strided_slice %47 {offsets = [0, 0], sizes = [8, 256], strides = [1, 1]} : vector<16x256xf32> to vector<8x256xf32>
    %59 = vector.extract_strided_slice %48 {offsets = [0, 0], sizes = [8, 256], strides = [1, 1]} : vector<16x256xf32> to vector<8x256xf32>
    %60 = vector.extract_strided_slice %49 {offsets = [0, 0], sizes = [8, 256], strides = [1, 1]} : vector<16x256xf32> to vector<8x256xf32>
    %61 = vector.extract_strided_slice %50 {offsets = [0, 0], sizes = [8, 256], strides = [1, 1]} : vector<16x256xf32> to vector<8x256xf32>
    %62 = vector.extract_strided_slice %51 {offsets = [0, 0], sizes = [8, 256], strides = [1, 1]} : vector<16x256xf32> to vector<8x256xf32>
    %63 = vector.extract_strided_slice %52 {offsets = [0, 0], sizes = [8, 256], strides = [1, 1]} : vector<16x256xf32> to vector<8x256xf32>
    %64 = vector.extract_strided_slice %53 {offsets = [0, 0], sizes = [8, 256], strides = [1, 1]} : vector<16x256xf32> to vector<8x256xf32>
    %65 = vector.extract_strided_slice %54 {offsets = [0, 0], sizes = [8, 256], strides = [1, 1]} : vector<16x256xf32> to vector<8x256xf32>
    %66 = tpu.concatenate %57, %58, %59, %60, %61, %62, %63, %64, %65 in 0 : vector<8x256xf32>, vector<8x256xf32>, vector<8x256xf32>, vector<8x256xf32>, vector<8x256xf32>, vector<8x256xf32>, vector<8x256xf32>, vector<8x256xf32>, vector<8x256xf32> -> vector<72x256xf32>
    %cst_20 = arith.constant dense<0.000000e+00> : vector<16x256xf32>
    %67 = tpu.matmul %55, %66, %cst_20 {dimension_numbers = #tpu.dot_dimension_numbers<[1], [0], [0], [1], [0, 0, 1, 1], [], []>} : vector<16x72xf32>, vector<72x256xf32>, vector<16x256xf32> -> vector<16x256xf32>
    %68 = vector.broadcast %56 : vector<16x1xf32> to vector<16x256xf32>
    %69 = arith.addf %67, %68 : vector<16x256xf32>
    %c0_21 = arith.constant 0 : index
    %c0_22 = arith.constant 0 : index
    %c0_23 = arith.constant 0 : index
    %70 = vector.load %arg6[%c0_21, %c0_22, %c0_23] : memref<2x16x256xf32, #tpu.memory_space<vmem>>, vector<1x16x256xf32>
    %71 = vector.shape_cast %70 : vector<1x16x256xf32> to vector<16x256xf32>
    %72 = vector.shape_cast %69 : vector<16x256xf32> to vector<1x16x256xf32>
    tpu.vector_store %arg6[%c0_21, %c0_22, %c0_23], %72 {strides = array<i32>} : memref<2x16x256xf32, #tpu.memory_space<vmem>>, vector<1x16x256xf32>,
    %73 = vector.extract_strided_slice %46 {offsets = [8, 0], sizes = [8, 256], strides = [1, 1]} : vector<16x256xf32> to vector<8x256xf32>
    %74 = vector.extract_strided_slice %47 {offsets = [8, 0], sizes = [8, 256], strides = [1, 1]} : vector<16x256xf32> to vector<8x256xf32>
    %75 = vector.extract_strided_slice %48 {offsets = [8, 0], sizes = [8, 256], strides = [1, 1]} : vector<16x256xf32> to vector<8x256xf32>
    %76 = vector.extract_strided_slice %49 {offsets = [8, 0], sizes = [8, 256], strides = [1, 1]} : vector<16x256xf32> to vector<8x256xf32>
    %77 = vector.extract_strided_slice %50 {offsets = [8, 0], sizes = [8, 256], strides = [1, 1]} : vector<16x256xf32> to vector<8x256xf32>
    %78 = vector.extract_strided_slice %51 {offsets = [8, 0], sizes = [8, 256], strides = [1, 1]} : vector<16x256xf32> to vector<8x256xf32>
    %79 = vector.extract_strided_slice %52 {offsets = [8, 0], sizes = [8, 256], strides = [1, 1]} : vector<16x256xf32> to vector<8x256xf32>
    %80 = vector.extract_strided_slice %53 {offsets = [8, 0], sizes = [8, 256], strides = [1, 1]} : vector<16x256xf32> to vector<8x256xf32>
    %81 = vector.extract_strided_slice %54 {offsets = [8, 0], sizes = [8, 256], strides = [1, 1]} : vector<16x256xf32> to vector<8x256xf32>
    %82 = tpu.concatenate %73, %74, %75, %76, %77, %78, %79, %80, %81 in 0 : vector<8x256xf32>, vector<8x256xf32>, vector<8x256xf32>, vector<8x256xf32>, vector<8x256xf32>, vector<8x256xf32>, vector<8x256xf32>, vector<8x256xf32>, vector<8x256xf32> -> vector<72x256xf32>
    %cst_24 = arith.constant dense<0.000000e+00> : vector<16x256xf32>
    %83 = tpu.matmul %55, %82, %cst_24 {dimension_numbers = #tpu.dot_dimension_numbers<[1], [0], [0], [1], [0, 0, 1, 1], [], []>} : vector<16x72xf32>, vector<72x256xf32>, vector<16x256xf32> -> vector<16x256xf32>
    %84 = vector.broadcast %56 : vector<16x1xf32> to vector<16x256xf32>
    %85 = arith.addf %83, %84 : vector<16x256xf32>
    %c1 = arith.constant 1 : index
    %c0_25 = arith.constant 0 : index
    %c0_26 = arith.constant 0 : index
    %86 = vector.load %arg6[%c1, %c0_25, %c0_26] : memref<2x16x256xf32, #tpu.memory_space<vmem>>, vector<1x16x256xf32>
    %87 = vector.shape_cast %86 : vector<1x16x256xf32> to vector<16x256xf32>
    %88 = vector.shape_cast %85 : vector<16x256xf32> to vector<1x16x256xf32>
    tpu.vector_store %arg6[%c1, %c0_25, %c0_26], %88 {strides = array<i32>} : memref<2x16x256xf32, #tpu.memory_space<vmem>>, vector<1x16x256xf32>,
    return
  }
  func.func @transform_0(%arg0: i32) -> (i32, i32) {
    %c0_i32 = arith.constant 0 : i32
    %c0_i32_0 = arith.constant 0 : i32
    %c0_i32_1 = arith.constant 0 : i32
    return %c0_i32, %c0_i32_0 : i32, i32
  }
  func.func @transform_1(%arg0: i32) -> (i32, i32) {
    %c0_i32 = arith.constant 0 : i32
    %c0_i32_0 = arith.constant 0 : i32
    %c0_i32_1 = arith.constant 0 : i32
    return %c0_i32, %c0_i32_0 : i32, i32
  }
  func.func @transform_2(%arg0: i32) -> (i32, i32) {
    %c0_i32 = arith.constant 0 : i32
    %c0_i32_0 = arith.constant 0 : i32
    %c0_i32_1 = arith.constant 0 : i32
    return %c0_i32, %c0_i32_0 : i32, i32
  }
  func.func @transform_3(%arg0: i32) -> (i32, i32) {
    %c0_i32 = arith.constant 0 : i32
    %c0_i32_0 = arith.constant 0 : i32
    %c0_i32_1 = arith.constant 0 : i32
    return %c0_i32, %c0_i32_0 : i32, i32
  }
  func.func @transform_4(%arg0: i32) -> (i32, i32) {
    %c0_i32 = arith.constant 0 : i32
    %c0_i32_0 = arith.constant 0 : i32
    %c0_i32_1 = arith.constant 0 : i32
    return %c0_i32, %c0_i32_0 : i32, i32
  }
  func.func @transform_5(%arg0: i32) -> (i32, i32, i32) {
    %c0_i32 = arith.constant 0 : i32
    %c0_i32_0 = arith.constant 0 : i32
    %c0_i32_1 = arith.constant 0 : i32
    %c0_i32_2 = arith.constant 0 : i32
    return %c0_i32, %c0_i32_0, %c0_i32_1 : i32, i32, i32
  }
}

</mosaic_0001>

<llo_original>
// kernel: scale_shift_conv2d_block.1
$region0: #{scale_shift_conv2d_block.1}
  #allocation0 [shape = 'u32[]', space=smem, size = 0x4, offset = 0x4, fixed_abs, tag = 'smem constant byte address 0x4 - core index']
  #allocation1 [shape = 'u32[144,128]{1,0:T(1,128)}', space=vmem, size = 0x12000, scoped, tag = 'internal scratch']
  %s0 = inlined_call_operand.vmem [shape: f32[16,256], index: 0, kind: input, shape index: {}]
  %s1 = inlined_call_operand.vmem [shape: f32[16,1], index: 1, kind: input, shape index: {}]
  %s2 = inlined_call_operand.vmem [shape: f32[16,1], index: 2, kind: input, shape index: {}]
  %s3 = inlined_call_operand.vmem [shape: f32[16,72], index: 3, kind: input, shape index: {}]
  %s4 = inlined_call_operand.vmem [shape: f32[16,1], index: 4, kind: input, shape index: {}]
  %s5 = inlined_call_operand.vmem [shape: f32[2,16,256], index: 5, kind: output, shape index: {}]
  %s6 = sld [smem:[#allocation0]]
  $region30: #{scale_shift_conv2d_block.1} parent=0
    _
  %s8 = ssub.s32 1, %s6
  %s9 = scalar_select 0, %s8, %s6
  // Predicated region
  $region2: #{scale_shift_conv2d_block.1} parent=0 // pred_check
    _
  $region3: #{scale_shift_conv2d_block.1} parent=0 // pred_check_branch
    %11 = sbr.rel (0) target = $region5
  $region4: #{scale_shift_conv2d_block.1} parent=0 // pred_region
    _
  $region5: #{scale_shift_conv2d_block.1} parent=0 // pred_fallthru
    _
  // Predicated region
  $region6: #{scale_shift_conv2d_block.1} parent=0 // pred_check
    _
  $region7: #{scale_shift_conv2d_block.1} parent=0 // pred_check_branch
    %13 = sbr.rel (0) target = $region9
  $region8: #{scale_shift_conv2d_block.1} parent=0 // pred_region
    _
  $region9: #{scale_shift_conv2d_block.1} parent=0 // pred_fallthru
    _
  // Predicated region
  $region10: #{scale_shift_conv2d_block.1} parent=0 // pred_check
    _
  $region11: #{scale_shift_conv2d_block.1} parent=0 // pred_check_branch
    %15 = sbr.rel (0) target = $region13
  $region12: #{scale_shift_conv2d_block.1} parent=0 // pred_region
    _
  $region13: #{scale_shift_conv2d_block.1} parent=0 // pred_fallthru
    _
  // Predicated region
  $region14: #{scale_shift_conv2d_block.1} parent=0 // pred_check
    _
  $region15: #{scale_shift_conv2d_block.1} parent=0 // pred_check_branch
    %17 = sbr.rel (0) target = $region17
  $region16: #{scale_shift_conv2d_block.1} parent=0 // pred_region
    _
  $region17: #{scale_shift_conv2d_block.1} parent=0 // pred_fallthru
    _
  // Predicated region
  $region18: #{scale_shift_conv2d_block.1} parent=0 // pred_check
    _
  $region19: #{scale_shift_conv2d_block.1} parent=0 // pred_check_branch
    %19 = sbr.rel (0) target = $region21
  $region20: #{scale_shift_conv2d_block.1} parent=0 // pred_region
    _
  $region21: #{scale_shift_conv2d_block.1} parent=0 // pred_fallthru
    _
  %v20 = vld [vmem:[%s0] sm:$0xff]
  %v21 = vld [vmem:[%s0 + $0x8] sm:$0xff]
  %v22 = vld [vmem:[%s0 + $0x10] sm:$0xff]
  %v23 = vld [vmem:[%s0 + $0x18] sm:$0xff]
  %v24 = vadd.f32 %v20, %v21
  %25 = vadd.xlane.f32.xlu0 %v24
  %v26 = vpop.xlane.xlu0 %25
  %v27 = vadd.f32 %v22, %v23
  %28 = vadd.xlane.f32.xlu0 %v27
  %v29 = vpop.xlane.xlu0 %28
  %v30 = vrcp.pop 256.0
  %v31 = vmul.f32 %v26, %v30
  %v32 = vmul.f32 %v29, %v30
  %v33 = vsub.f32 %v20, %v31
  %v34 = vsub.f32 %v21, %v31
  %v35 = vsub.f32 %v22, %v32
  %v36 = vsub.f32 %v23, %v32
  %v37 = vmul.f32 %v33, %v33
  %v38 = vmul.f32 %v34, %v34
  %v39 = vmul.f32 %v35, %v35
  %v40 = vmul.f32 %v36, %v36
  %v41 = vadd.f32 %v37, %v38
  %42 = vadd.xlane.f32.xlu0 %v41
  %v43 = vpop.xlane.xlu0 %42
  %v44 = vadd.f32 %v39, %v40
  %45 = vadd.xlane.f32.xlu0 %v44
  %v46 = vpop.xlane.xlu0 %45
  %v47 = vmul.f32 %v43, %v30
  %v48 = vmul.f32 %v46, %v30
  %v49 = vadd.f32 %v47, 1e-05
  %v50 = vadd.f32 %v48, 1e-05
  %v51 = vrsqrt.pop %v49
  %v52 = vrsqrt.pop %v50
  %v53 = vmul.f32 %v33, %v51
  %v54 = vmul.f32 %v34, %v51
  %v55 = vmul.f32 %v35, %v52
  %v56 = vmul.f32 %v36, %v52
  %v57 = vld [vmem:[%s1] sm:$0xff]
  %v58 = vld [vmem:[%s1 + $0x8] sm:$0xff]
  %60 = vset.pattern.permute.xlu0 0
  %61 = vperm.xlu0 %60, %v57
  %v62 = vpop.permute.xlu0 %61
  %65 = vset.pattern.permute.xlu0 0
  %66 = vperm.xlu0 %65, %v58
  %v67 = vpop.permute.xlu0 %66
  %v69 = vmul.f32 %v53, %v62
  %v70 = vmul.f32 %v54, %v62
  %v71 = vmul.f32 %v55, %v67
  %v72 = vmul.f32 %v56, %v67
  %v73 = vld [vmem:[%s2] sm:$0xff]
  %v74 = vld [vmem:[%s2 + $0x8] sm:$0xff]
  %76 = vset.pattern.permute.xlu0 0
  %77 = vperm.xlu0 %76, %v73
  %v78 = vpop.permute.xlu0 %77
  %81 = vset.pattern.permute.xlu0 0
  %82 = vperm.xlu0 %81, %v74
  %v83 = vpop.permute.xlu0 %82
  %v85 = vadd.f32 %v69, %v78
  %v86 = vadd.f32 %v70, %v78
  %v87 = vadd.f32 %v71, %v83
  %v88 = vadd.f32 %v72, %v83
  %v89 = vand.u32 2147483647, %v85
  %v90 = vand.u32 2147483647, %v86
  %v91 = vand.u32 2147483647, %v87
  %v92 = vand.u32 2147483647, %v88
  %v93 = vsub.f32 0.0, %v89
  %v94 = vsub.f32 0.0, %v90
  %v95 = vsub.f32 0.0, %v91
  %v96 = vsub.f32 0.0, %v92
  %v97 = vmul.f32 %v93, 1.442695
  %v98 = vpow.pop %v97
  %v99 = vmul.f32 %v94, 1.442695
  %v100 = vpow.pop %v99
  %v101 = vmul.f32 %v95, 1.442695
  %v102 = vpow.pop %v101
  %v103 = vmul.f32 %v96, 1.442695
  %v104 = vpow.pop %v103
  %vm105 = vcmp.ge.f32.partialorder %v85, 0.0
  %vm106 = vcmp.ge.f32.partialorder %v86, 0.0
  %vm107 = vcmp.ge.f32.partialorder %v87, 0.0
  %vm108 = vcmp.ge.f32.partialorder %v88, 0.0
  %v109 = vmul.f32 %v98, 2.0
  %v110 = vmul.f32 %v100, 2.0
  %v111 = vmul.f32 %v102, 2.0
  %v112 = vmul.f32 %v104, 2.0
  %v113 = vadd.f32 %v109, 1.0
  %v114 = vadd.f32 %v110, 1.0
  %v115 = vadd.f32 %v111, 1.0
  %v116 = vadd.f32 %v112, 1.0
  %v117 = vadd.f32 %v98, 2.0
  %v118 = vadd.f32 %v100, 2.0
  %v119 = vadd.f32 %v102, 2.0
  %v120 = vadd.f32 %v104, 2.0
  %v121 = vmul.f32 %v98, %v117
  %v122 = vmul.f32 %v100, %v118
  %v123 = vmul.f32 %v102, %v119
  %v124 = vmul.f32 %v104, %v120
  %v125 = vsel %vm105, %v113, %v121
  %v126 = vsel %vm106, %v114, %v122
  %v127 = vsel %vm107, %v115, %v123
  %v128 = vsel %vm108, %v116, %v124
  %v129 = vmul.f32 %v98, %v98
  %v130 = vmul.f32 %v100, %v100
  %v131 = vmul.f32 %v102, %v102
  %v132 = vmul.f32 %v104, %v104
  %v133 = vsel %vm105, %v129, 1.0
  %v134 = vsel %vm106, %v130, 1.0
  %v135 = vsel %vm107, %v131, 1.0
  %v136 = vsel %vm108, %v132, 1.0
  %v137 = vmul.f32 %v133, 2.0
  %v138 = vmul.f32 %v134, 2.0
  %v139 = vmul.f32 %v135, 2.0
  %v140 = vmul.f32 %v136, 2.0
  %v141 = vadd.f32 %v125, %v137
  %v142 = vadd.f32 %v126, %v138
  %v143 = vadd.f32 %v127, %v139
  %v144 = vadd.f32 %v128, %v140
  %v145 = vmul.f32 %v85, %v125
  %v146 = vmul.f32 %v86, %v126
  %v147 = vmul.f32 %v87, %v127
  %v148 = vmul.f32 %v88, %v128
  %v149 = vrcp.pop %v141
  %v150 = vmul.f32 %v145, %v149
  %v151 = vrcp.pop %v142
  %v152 = vmul.f32 %v146, %v151
  %v153 = vrcp.pop %v143
  %v154 = vmul.f32 %v147, %v153
  %v155 = vrcp.pop %v144
  %v156 = vmul.f32 %v148, %v155
  %157 = vrot.lane.b32.xlu0 %v150, 127
  %v158 = vpop.permute.xlu0 %157
  %159 = vrot.lane.b32.xlu0 %v154, 127
  %v160 = vpop.permute.xlu0 %159
  %161 = vrot.lane.b32.xlu0 %v152, 127
  %v162 = vpop.permute.xlu0 %161
  %163 = vrot.lane.b32.xlu0 %v156, 127
  %v164 = vpop.permute.xlu0 %163
  %v165 = vlaneseq
  %v166 = vand.u32 %v165, 127
  %vm167 = vcmp.lt.s32.totalorder %v166, 127
  %v168 = vsel %vm167, %v158, %v162
  %v169 = vsel %vm167, %v160, %v164
  %v170 = vsel %vm167, %v162, %v158
  %v171 = vsel %vm167, %v164, %v160
  %172 = vrot.lane.b32.xlu0 %v150, 126
  %v173 = vpop.permute.xlu0 %172
  %174 = vrot.lane.b32.xlu0 %v154, 126
  %v175 = vpop.permute.xlu0 %174
  %176 = vrot.lane.b32.xlu0 %v152, 126
  %v177 = vpop.permute.xlu0 %176
  %178 = vrot.lane.b32.xlu0 %v156, 126
  %v179 = vpop.permute.xlu0 %178
  %vm180 = vcmp.lt.s32.totalorder %v166, 126
  %v181 = vsel %vm180, %v173, %v177
  %v182 = vsel %vm180, %v175, %v179
  %v183 = vsel %vm180, %v177, %v173
  %v184 = vsel %vm180, %v179, %v175
  %185 = vrot.lane.b32.xlu0 %v150, 112
  %v186 = vpop.permute.xlu0 %185
  %187 = vrot.lane.b32.xlu0 %v154, 112
  %v188 = vpop.permute.xlu0 %187
  %189 = vrot.lane.b32.xlu0 %v152, 112
  %v190 = vpop.permute.xlu0 %189
  %191 = vrot.lane.b32.xlu0 %v156, 112
  %v192 = vpop.permute.xlu0 %191
  %vm193 = vcmp.lt.s32.totalorder %v166, 112
  %v194 = vsel %vm193, %v186, %v190
  %v195 = vsel %vm193, %v188, %v192
  %v196 = vsel %vm193, %v190, %v186
  %v197 = vsel %vm193, %v192, %v188
  %198 = vrot.lane.b32.xlu0 %v150, 111
  %v199 = vpop.permute.xlu0 %198
  %200 = vrot.lane.b32.xlu0 %v154, 111
  %v201 = vpop.permute.xlu0 %200
  %202 = vrot.lane.b32.xlu0 %v152, 111
  %v203 = vpop.permute.xlu0 %202
  %204 = vrot.lane.b32.xlu0 %v156, 111
  %v205 = vpop.permute.xlu0 %204
  %vm206 = vcmp.lt.s32.totalorder %v166, 111
  %v207 = vsel %vm206, %v199, %v203
  %v208 = vsel %vm206, %v201, %v205
  %v209 = vsel %vm206, %v203, %v199
  %v210 = vsel %vm206, %v205, %v201
  %211 = vrot.lane.b32.xlu0 %v150, 110
  %v212 = vpop.permute.xlu0 %211
  %213 = vrot.lane.b32.xlu0 %v154, 110
  %v214 = vpop.permute.xlu0 %213
  %215 = vrot.lane.b32.xlu0 %v152, 110
  %v216 = vpop.permute.xlu0 %215
  %217 = vrot.lane.b32.xlu0 %v156, 110
  %v218 = vpop.permute.xlu0 %217
  %vm219 = vcmp.lt.s32.totalorder %v166, 110
  %v220 = vsel %vm219, %v212, %v216
  %v221 = vsel %vm219, %v214, %v218
  %v222 = vsel %vm219, %v216, %v212
  %v223 = vsel %vm219, %v218, %v214
  %224 = vrot.lane.b32.xlu0 %v150, 96
  %v225 = vpop.permute.xlu0 %224
  %226 = vrot.lane.b32.xlu0 %v154, 96
  %v227 = vpop.permute.xlu0 %226
  %228 = vrot.lane.b32.xlu0 %v152, 96
  %v229 = vpop.permute.xlu0 %228
  %230 = vrot.lane.b32.xlu0 %v156, 96
  %v231 = vpop.permute.xlu0 %230
  %vm232 = vcmp.lt.s32.totalorder %v166, 96
  %v233 = vsel %vm232, %v225, %v229
  %v234 = vsel %vm232, %v227, %v231
  %v235 = vsel %vm232, %v229, %v225
  %v236 = vsel %vm232, %v231, %v227
  %237 = vrot.lane.b32.xlu0 %v150, 95
  %v238 = vpop.permute.xlu0 %237
  %239 = vrot.lane.b32.xlu0 %v154, 95
  %v240 = vpop.permute.xlu0 %239
  %241 = vrot.lane.b32.xlu0 %v152, 95
  %v242 = vpop.permute.xlu0 %241
  %243 = vrot.lane.b32.xlu0 %v156, 95
  %v244 = vpop.permute.xlu0 %243
  %vm245 = vcmp.lt.s32.totalorder %v166, 95
  %v246 = vsel %vm245, %v238, %v242
  %v247 = vsel %vm245, %v240, %v244
  %v248 = vsel %vm245, %v242, %v238
  %v249 = vsel %vm245, %v244, %v240
  %250 = vrot.lane.b32.xlu0 %v150, 94
  %v251 = vpop.permute.xlu0 %250
  %252 = vrot.lane.b32.xlu0 %v154, 94
  %v253 = vpop.permute.xlu0 %252
  %254 = vrot.lane.b32.xlu0 %v152, 94
  %v255 = vpop.permute.xlu0 %254
  %256 = vrot.lane.b32.xlu0 %v156, 94
  %v257 = vpop.permute.xlu0 %256
  %vm258 = vcmp.lt.s32.totalorder %v166, 94
  %v259 = vsel %vm258, %v251, %v255
  %v260 = vsel %vm258, %v253, %v257
  %v261 = vsel %vm258, %v255, %v251
  %v262 = vsel %vm258, %v257, %v253
  %v263 = vld [vmem:[%s3] sm:$0xff]
  %v264 = vld [vmem:[%s3 + $0x8] sm:$0xff]
  %v265 = vld [vmem:[%s4] sm:$0xff]
  %v266 = vld [vmem:[%s4 + $0x8] sm:$0xff]
  %268 = vset.pattern.permute.xlu0 0
  %269 = vperm.xlu0 %268, %v265
  %v270 = vpop.permute.xlu0 %269
  %273 = vset.pattern.permute.xlu0 0
  %274 = vperm.xlu0 %273, %v266
  %v275 = vpop.permute.xlu0 %274
  %vm277 = vcmask 588800
  %v279 = vsel %vm277, %v263, 0
  %v282 = vsel %vm277, %v264, 0
  %284 = vmatprep.subr.mxu0 %v152
  %285 = vmatpush1.msra.mxu0 %v150
  %286 = vmatprep.subr.mxu0 %v170
  %287 = vmatpush1.msra.mxu0 %v168
  %288 = vmatprep.subr.mxu0 %v183
  %289 = vmatpush1.msra.mxu0 %v181
  %290 = vmatprep.subr.mxu0 %v196
  %291 = vmatpush1.msra.mxu0 %v194
  %292 = vmatprep.subr.mxu0 %v209
  %293 = vmatpush1.msra.mxu0 %v207
  %294 = vmatprep.subr.mxu0 %v222
  %295 = vmatpush1.msra.mxu0 %v220
  %296 = vmatprep.subr.mxu0 %v235
  %297 = vmatpush1.msra.mxu0 %v233
  %298 = vmatprep.subr.mxu0 %v248
  %299 = vmatpush1.msra.mxu0 %v246
  %300 = vmatprep.subr.mxu0 %v261
  %301 = vmatpush1.msra.mxu0 %v259
  %302 = vmatprep.subr.mxu0 0.0
  %303 = vmatpush1.msra.mxu0 0.0
  %304 = vmatprep.subr.mxu0 0.0
  %305 = vmatpush1.msra.mxu0 0.0
  %306 = vmatprep.subr.mxu0 0.0
  %307 = vmatpush1.msra.mxu0 0.0
  %308 = vmatprep.subr.mxu0 0.0
  %309 = vmatpush1.msra.mxu0 0.0
  %310 = vmatprep.subr.mxu0 0.0
  %311 = vmatpush1.msra.mxu0 0.0
  %312 = vmatprep.subr.mxu0 0.0
  %313 = vmatpush1.msra.mxu0 0.0
  %314 = vmatprep.subr.mxu0 0.0
  %315 = vmatpush1.msra.mxu0 0.0
  %316 = vmatprep.subr.mxu0 0.0
  %317 = vmatpush1.msra.mxu0 0.0
  %318 = vmatprep.subr.mxu0 0.0
  %319 = vmatpush1.msra.mxu0 0.0
  %320 = vmatprep.subr.mxu0 0.0
  %321 = vmatpush1.msra.mxu0 0.0
  %322 = vmatprep.subr.mxu0 0.0
  %323 = vmatpush1.msra.mxu0 0.0
  %324 = vmatprep.subr.mxu0 0.0
  %325 = vmatpush1.msra.mxu0 0.0
  %326 = vmatprep.subr.mxu0 0.0
  %327 = vmatpush1.msra.mxu0 0.0
  %328 = vmatprep.subr.mxu0 0.0
  %329 = vmatpush1.msra.mxu0 0.0
  %330 = vmatprep.subr.mxu0 0.0
  %331 = vmatpush1.msra.mxu0 0.0
  %332 = vmatprep.subr.mxu0 0.0
  %333 = vmatpush1.msra.mxu0 0.0
  %334 = vmatprep.subr.mxu0 0.0
  %335 = vmatpush1.msra.mxu0 0.0
  %336 = vmatprep.subr.mxu0 0.0
  %337 = vmatpush1.msra.mxu0 0.0
  %338 = vmatprep.subr.mxu0 0.0
  %339 = vmatpush1.msra.mxu0 0.0
  %340 = vmatprep.subr.mxu0 0.0
  %341 = vmatpush1.msra.mxu0 0.0
  %342 = vmatprep.subr.mxu0 0.0
  %343 = vmatpush1.msra.mxu0 0.0
  %344 = vmatprep.subr.mxu0 0.0
  %345 = vmatpush1.msra.mxu0 0.0
  %346 = vmatprep.subr.mxu0 0.0
  %347 = vmatpush1.msra.mxu0 0.0
  %348 = vmatprep.mubr.f32.mxu0 0.0
  %349 = vmatmul.mubr.f32.gmra.mrb[0].mxu0 %v279
  %v350 = vpop.f32.mrb[0].mxu0
  %v351 = vadd.f32 %v270, %v350
  %v352 = vpop.f32.mrb[0].mxu0
  %v353 = vadd.f32 %v270, %v352
  %354 = vmatprep.mubr.f32.mxu0 0.0
  %355 = vmatmul.mubr.f32.gmra.mrb[0].mxu0 %v282
  %v356 = vpop.f32.mrb[0].mxu0
  %v357 = vadd.f32 %v275, %v356
  %v358 = vpop.f32.mrb[0].mxu0
  %v359 = vadd.f32 %v275, %v358
  %360 = vdwg.mxu0
  %361 = vst [vmem:[%s5] sm:$0xff] %v351
  %362 = vst [vmem:[%s5 + $0x8] sm:$0xff] %v353
  %363 = vst [vmem:[%s5 + $0x10] sm:$0xff] %v357
  %364 = vst [vmem:[%s5 + $0x18] sm:$0xff] %v359
  %365 = vmatprep.subr.mxu0 %v156
  %366 = vmatpush1.msra.mxu0 %v154
  %367 = vmatprep.subr.mxu0 %v171
  %368 = vmatpush1.msra.mxu0 %v169
  %369 = vmatprep.subr.mxu0 %v184
  %370 = vmatpush1.msra.mxu0 %v182
  %371 = vmatprep.subr.mxu0 %v197
  %372 = vmatpush1.msra.mxu0 %v195
  %373 = vmatprep.subr.mxu0 %v210
  %374 = vmatpush1.msra.mxu0 %v208
  %375 = vmatprep.subr.mxu0 %v223
  %376 = vmatpush1.msra.mxu0 %v221
  %377 = vmatprep.subr.mxu0 %v236
  %378 = vmatpush1.msra.mxu0 %v234
  %379 = vmatprep.subr.mxu0 %v249
  %380 = vmatpush1.msra.mxu0 %v247
  %381 = vmatprep.subr.mxu0 %v262
  %382 = vmatpush1.msra.mxu0 %v260
  %383 = vmatprep.subr.mxu0 0.0
  %384 = vmatpush1.msra.mxu0 0.0
  %385 = vmatprep.subr.mxu0 0.0
  %386 = vmatpush1.msra.mxu0 0.0
  %387 = vmatprep.subr.mxu0 0.0
  %388 = vmatpush1.msra.mxu0 0.0
  %389 = vmatprep.subr.mxu0 0.0
  %390 = vmatpush1.msra.mxu0 0.0
  %391 = vmatprep.subr.mxu0 0.0
  %392 = vmatpush1.msra.mxu0 0.0
  %393 = vmatprep.subr.mxu0 0.0
  %394 = vmatpush1.msra.mxu0 0.0
  %395 = vmatprep.subr.mxu0 0.0
  %396 = vmatpush1.msra.mxu0 0.0
  %397 = vmatprep.subr.mxu0 0.0
  %398 = vmatpush1.msra.mxu0 0.0
  %399 = vmatprep.subr.mxu0 0.0
  %400 = vmatpush1.msra.mxu0 0.0
  %401 = vmatprep.subr.mxu0 0.0
  %402 = vmatpush1.msra.mxu0 0.0
  %403 = vmatprep.subr.mxu0 0.0
  %404 = vmatpush1.msra.mxu0 0.0
  %405 = vmatprep.subr.mxu0 0.0
  %406 = vmatpush1.msra.mxu0 0.0
  %407 = vmatprep.subr.mxu0 0.0
  %408 = vmatpush1.msra.mxu0 0.0
  %409 = vmatprep.subr.mxu0 0.0
  %410 = vmatpush1.msra.mxu0 0.0
  %411 = vmatprep.subr.mxu0 0.0
  %412 = vmatpush1.msra.mxu0 0.0
  %413 = vmatprep.subr.mxu0 0.0
  %414 = vmatpush1.msra.mxu0 0.0
  %415 = vmatprep.subr.mxu0 0.0
  %416 = vmatpush1.msra.mxu0 0.0
  %417 = vmatprep.subr.mxu0 0.0
  %418 = vmatpush1.msra.mxu0 0.0
  %419 = vmatprep.subr.mxu0 0.0
  %420 = vmatpush1.msra.mxu0 0.0
  %421 = vmatprep.subr.mxu0 0.0
  %422 = vmatpush1.msra.mxu0 0.0
  %423 = vmatprep.subr.mxu0 0.0
  %424 = vmatpush1.msra.mxu0 0.0
  %425 = vmatprep.subr.mxu0 0.0
  %426 = vmatpush1.msra.mxu0 0.0
  %427 = vmatprep.subr.mxu0 0.0
  %428 = vmatpush1.msra.mxu0 0.0
  %429 = vmatprep.mubr.f32.mxu0 0.0
  %430 = vmatmul.mubr.f32.gmra.mrb[0].mxu0 %v279
  %v431 = vpop.f32.mrb[0].mxu0
  %v432 = vadd.f32 %v270, %v431
  %v433 = vpop.f32.mrb[0].mxu0
  %v434 = vadd.f32 %v270, %v433
  %435 = vmatprep.mubr.f32.mxu0 0.0
  %436 = vmatmul.mubr.f32.gmra.mrb[0].mxu0 %v282
  %v437 = vpop.f32.mrb[0].mxu0
  %v438 = vadd.f32 %v275, %v437
  %v439 = vpop.f32.mrb[0].mxu0
  %v440 = vadd.f32 %v275, %v439
  %441 = vdwg.mxu0
  %s442 = scalar_lea.vmem %s5, 32
  %443 = vst [vmem:[%s442] sm:$0xff] %v432
  %444 = vst [vmem:[%s442 + $0x8] sm:$0xff] %v434
  %445 = vst [vmem:[%s442 + $0x10] sm:$0xff] %v438
  %446 = vst [vmem:[%s442 + $0x18] sm:$0xff] %v440
  // Predicated region
  $region22: #{scale_shift_conv2d_block.1} parent=0 // pred_check
    _
  $region23: #{scale_shift_conv2d_block.1} parent=0 // pred_check_branch
    %448 = sbr.rel (0) target = $region25
  $region24: #{scale_shift_conv2d_block.1} parent=0 // pred_region
    _
  $region25: #{scale_shift_conv2d_block.1} parent=0 // pred_fallthru
    _
  // Predicated region
  $region26: #{scale_shift_conv2d_block.1} parent=0 // pred_check
    _
  $region27: #{scale_shift_conv2d_block.1} parent=0 // pred_check_branch
    %450 = sbr.rel (0) target = $region29
  $region28: #{scale_shift_conv2d_block.1} parent=0 // pred_region
    _
  $region29: #{scale_shift_conv2d_block.1} parent=0 // pred_fallthru
    _

</llo_original>
